<compile_context>
chip_gen: v5e
topology: v5e:2x2
jax: 0.10.0
libtpu: 0.0.40
codegen_flags: <defaults>
</compile_context>

<pallas_src>
import functools

import jax
import jax.numpy as jnp
from jax.experimental import pallas as pl
from jax.experimental.pallas import tpu as pltpu


_VMEM_LIMIT = 32 * 1024 * 1024   # <= scoped/physical on v5e/v6e (128 MiB) and v7x (64 MiB)
_Z_BUDGET = 16 * 1024 * 1024     # for the double-buffered z blocks (dominant VMEM user)
_ROW_CAP = 1024                  # 512-1024-row tiles already reach ~85% of HBM roofline


def _round_up(x, m):
    return -(-x // m) * m


def _choose_row_tile(n, row_lanes):
    """Rows per z block: multiple of 8, under the VMEM budget, capped, <= round_up(n, 8)."""
    if n < 8:
        return n  # full-array block (legal: equals the full dim)
    row_bytes = _round_up(row_lanes, 128) * 4                   # f32, lane-padded
    by_budget = max(8, (_Z_BUDGET // (2 * row_bytes)) // 8 * 8)  # double-buffered
    return min(_ROW_CAP, by_budget, _round_up(n, 8))


def _phase1_partial_kernel(z_ref, w1_ref, b1_ref, part_ref, *,
                           n_total, tn, tiles_per_chunk):
    """Per-chunk partial sums over rows of tanh(z_flat @ W1_blockdiag + b1_tiled)."""
    c = pl.program_id(0)   # chunk axis (parallel; shards across v7x's 2 TCs)
    i = pl.program_id(1)   # N-tile within chunk (reduction axis)

    @pl.when(i == 0)
    def _init():
        part_ref[...] = jnp.zeros_like(part_ref)

    # Unclamped global row ids of this tile, for tail / overhang masking.
    row0 = (c * tiles_per_chunk + i) * tn
    rows = row0 + jax.lax.broadcasted_iota(jnp.int32, (z_ref.shape[0], 1), 0)

    h = jnp.tanh(
        jnp.dot(z_ref[...], w1_ref[...], preferred_element_type=jnp.float32)
        + b1_ref[...]
    )                                                    # (tn, M*H), full-lane
    h = jnp.where(rows < n_total, h, 0.0)                # pad rows would leak tanh(b1)

    if tn % 8 == 0:
        # Partial sublane reduction: vreg-aligned view, pure VALU adds. The final
        # 8-row + cross-chunk reduce happens in the wrapper (tiny).
        part_ref[...] += jnp.sum(h.reshape(tn // 8, 8, h.shape[-1]), axis=0)
    else:
        # Only reachable when N < 8 (tn == N): full reduce into row 0.
        part_ref[0:1, :] = part_ref[0:1, :] + jnp.sum(h, axis=0, keepdims=True)


def _phase2_weighted_sum_kernel(z_ref, b_ref, o_ref):
    """out_tile = z_flat_tile @ B, with B the beta-scaled selection matrix."""
    o_ref[...] = jnp.dot(z_ref[...], b_ref[...],
                         preferred_element_type=jnp.float32).astype(o_ref.dtype)


def rela_attention(z, w1, b1, w2):
    """z: (N, M, D) f32; w1: (D, H); b1: (1, H); w2: (H, 1). Returns (N, D)."""
    N, M, D = z.shape
    H = w1.shape[1]
    MD, MH = M * D, M * H

    # ---- wrapper-side prep: free reshapes or tiny (<= 64 KB) parameter ops -------
    z_flat = z.reshape(N, MD)                                        # contiguous -> free
    w1_blk = jnp.kron(jnp.eye(M, dtype=w1.dtype), w1)                # (MD, MH) block-diag
    b1_tiled = jnp.tile(b1.reshape(1, H), (1, M))                    # (1, MH)
    w2_blk = jnp.kron(jnp.eye(M, dtype=w2.dtype), w2.reshape(H, 1))  # (MH, M)
    # TODO(synk): cast z/w1_blk to bf16 (keep f32 accumulation + f32 tanh/softmax) once
    # shapes leave toy sizes -- halves z HBM traffic (kernel is DMA-bound) and hits the
    # native bf16 MXU on v6e/v7x; needs the 1e-5 check loosened.

    tn = _choose_row_tile(N, MD)
    total_tiles = pl.cdiv(N, tn)
    n_chunks = 2 if total_tiles >= 2 else 1        # phase-1 core split (v7x: 2 TCs)
    tiles_per_chunk = pl.cdiv(total_tiles, n_chunks)

    # Clamp so an overhanging (fully out-of-range) tile of the last chunk re-reads a
    # valid tile; its rows are zeroed by the in-kernel mask.
    def _z1_map(c, i):
        return (jnp.minimum(c * tiles_per_chunk + i, total_tiles - 1), 0)

    # ---- phase 1: per-chunk partial sums of the tanh projection ------------------
    partials = pl.pallas_call(
        functools.partial(_phase1_partial_kernel, n_total=N, tn=tn,
                          tiles_per_chunk=tiles_per_chunk),
        out_shape=jax.ShapeDtypeStruct((n_chunks * 8, MH), jnp.float32),
        grid=(n_chunks, tiles_per_chunk),
        in_specs=[
            pl.BlockSpec((tn, MD), _z1_map),                  # z tile (lane-dense)
            pl.BlockSpec((MD, MH), lambda c, i: (0, 0)),      # block-diag W1 (resident)
            pl.BlockSpec((1, MH), lambda c, i: (0, 0)),       # tiled bias (resident)
        ],
        out_specs=pl.BlockSpec((8, MH), lambda c, i: (c, 0)),  # per-chunk accumulator
        compiler_params=pltpu.CompilerParams(
            dimension_semantics=("parallel", "arbitrary"),
            vmem_limit_bytes=_VMEM_LIMIT,
        ),
    )(z_flat, w1_blk, b1_tiled)

    # ---- tiny finalize in the wrapper: combine, w2 contraction, mean, softmax ----
    s = jnp.sum(partials, axis=0, keepdims=True)                  # (1, MH)
    wm = (s @ w2_blk) * (1.0 / N)                                 # (1, M) relation logits
    beta = jax.nn.softmax(wm, axis=1)                             # (1, M)
    # Beta-scaled selection matrix: B[m*D + d, d] = beta[m]
    b_sel = jnp.kron(beta.reshape(M, 1).astype(z.dtype), jnp.eye(D, dtype=z.dtype))

    # ---- phase 2: out = z_flat @ B, tiled over N (parallel) ----------------------
    # TODO(synk): if phase-2 stores ever dominate, present the output lane-dense by
    # folding 128/D rows into the last axis (free reshape); secondary to z traffic.
    out = pl.pallas_call(
        _phase2_weighted_sum_kernel,
        out_shape=jax.ShapeDtypeStruct((N, D), z.dtype),
        grid=(total_tiles,),
        in_specs=[
            pl.BlockSpec((tn, MD), lambda i: (i, 0)),         # z tile (lane-dense)
            pl.BlockSpec((MD, D), lambda i: (0, 0)),          # selection matrix (resident)
        ],
        out_specs=pl.BlockSpec((tn, D), lambda i: (i, 0)),
        compiler_params=pltpu.CompilerParams(
            dimension_semantics=("parallel",),
            vmem_limit_bytes=_VMEM_LIMIT,
        ),
    )(z_flat, b_sel)
    return out


def _reference(z, w1, b1, w2):
    h = jnp.tanh(z @ w1 + b1[0])            # (N, M, H)
    w = h @ w2                              # (N, M, 1)
    wm = jnp.mean(w, axis=0)                # (M, 1)
    beta = jax.nn.softmax(wm, axis=0)       # (M, 1)
    return jnp.sum(beta[None] * z, axis=1)  # (N, D)


if __name__ == "__main__":
    # small shapes consistent with the module: N nodes, M relations, in_size D, hidden H
    N, M, D, H = 8, 4, 32, 32

    key = jax.random.PRNGKey(0)
    kz, k1, kb, k2 = jax.random.split(key, 4)
    z = jax.random.normal(kz, (N, M, D), dtype=jnp.float32)
    # synthetic params for nn.Linear(in_size, hidden) + nn.Linear(hidden, 1, bias=False)
    w1 = 0.1 * jax.random.normal(k1, (D, H), dtype=jnp.float32)
    b1 = 0.1 * jax.random.normal(kb, (1, H), dtype=jnp.float32)
    w2 = 0.1 * jax.random.normal(k2, (H, 1), dtype=jnp.float32)

    out = rela_attention(z, w1, b1, w2)
    jax.block_until_ready(out)

    ref = _reference(z, w1, b1, w2)
    assert out.shape == (N, D)
    assert jnp.allclose(out, ref, atol=1e-5, rtol=1e-5), "Pallas kernel mismatch vs JAX reference"
    print("KERNEL_OK")
</pallas_src>

<mosaic_0001>
module attributes {stable_mosaic.version = 11 : i64} {
  func.func @_phase1_partial_kernel(%arg0: i32, %arg1: i32, %arg2: memref<8x128xf32, #tpu.memory_space<vmem>>, %arg3: memref<128x128xf32, #tpu.memory_space<vmem>>, %arg4: memref<1x128xf32, #tpu.memory_space<vmem>>, %arg5: memref<8x128xf32, #tpu.memory_space<vmem>>) attributes {dimension_semantics = [#tpu.dimension_semantics<parallel>, #tpu.dimension_semantics<arbitrary>], iteration_bounds = array<i64: 1, 1>, scalar_prefetch = 0 : i64, scratch_operands = 0 : i64, tpu.core_type = #tpu.core_type<tc>, window_params = [{transform_indices = @transform_0, window_bounds = array<i64: 8, 128>}, {pipeline_mode = #tpu.pipeline_mode<synchronous>, transform_indices = @transform_1, window_bounds = array<i64: 128, 128>}, {pipeline_mode = #tpu.pipeline_mode<synchronous>, transform_indices = @transform_2, window_bounds = array<i64: 1, 128>}, {transform_indices = @transform_3, window_bounds = array<i64: 8, 128>}]} {
    %c0_i32 = arith.constant 0 : i32
    %0 = arith.cmpi eq, %arg1, %c0_i32 : i32
    %1 = arith.extui %0 : i1 to i32
    %c0_i32_0 = arith.constant 0 : i32
    %2 = arith.cmpi ne, %1, %c0_i32_0 : i32
    scf.if %2 {
      %cst_13 = arith.constant 0.000000e+00 : f32
      %27 = vector.broadcast %cst_13 : f32 to vector<8x128xf32>
      %c0_14 = arith.constant 0 : index
      %c0_15 = arith.constant 0 : index
      %28 = vector.load %arg5[%c0_14, %c0_15] : memref<8x128xf32, #tpu.memory_space<vmem>>, vector<8x128xf32>
      tpu.vector_store %arg5[%c0_14, %c0_15], %27 {strides = array<i32>} : memref<8x128xf32, #tpu.memory_space<vmem>>, vector<8x128xf32>,
    } else {
    }
    %c1_i32 = arith.constant 1 : i32
    %3 = arith.muli %arg0, %c1_i32 : i32
    %4 = arith.addi %3, %arg1 : i32
    %c8_i32 = arith.constant 8 : i32
    %5 = arith.muli %4, %c8_i32 : i32
    %6 = tpu.iota {dimensions = array<i32: 0>} : vector<8x1xi32>
    %7 = vector.broadcast %5 : i32 to vector<8x1xi32>
    %8 = arith.addi %7, %6 : vector<8x1xi32>
    %c0 = arith.constant 0 : index
    %c0_1 = arith.constant 0 : index
    %9 = vector.load %arg2[%c0, %c0_1] : memref<8x128xf32, #tpu.memory_space<vmem>>, vector<8x128xf32>
    %c0_2 = arith.constant 0 : index
    %c0_3 = arith.constant 0 : index
    %10 = vector.load %arg3[%c0_2, %c0_3] : memref<128x128xf32, #tpu.memory_space<vmem>>, vector<128x128xf32>
    %cst = arith.constant dense<0.000000e+00> : vector<8x128xf32>
    %11 = tpu.matmul %9, %10, %cst {dimension_numbers = #tpu.dot_dimension_numbers<[1], [0], [0], [1], [0, 0, 1, 1], [], []>} : vector<8x128xf32>, vector<128x128xf32>, vector<8x128xf32> -> vector<8x128xf32>
    %c0_4 = arith.constant 0 : index
    %c0_5 = arith.constant 0 : index
    %12 = vector.load %arg4[%c0_4, %c0_5] : memref<1x128xf32, #tpu.memory_space<vmem>>, vector<1x128xf32>
    %13 = vector.broadcast %12 : vector<1x128xf32> to vector<8x128xf32>
    %14 = arith.addf %11, %13 : vector<8x128xf32>
    %15 = math.tanh %14 : vector<8x128xf32>
    %c8_i32_6 = arith.constant 8 : i32
    %16 = vector.broadcast %c8_i32_6 : i32 to vector<8x1xi32>
    %17 = arith.cmpi slt, %8, %16 : vector<8x1xi32>
    %cst_7 = arith.constant 0.000000e+00 : f32
    %18 = vector.shape_cast %17 : vector<8x1xi1> to vector<8x1xi1>
    %19 = vector.broadcast %18 : vector<8x1xi1> to vector<8x128xi1>
    %20 = vector.broadcast %cst_7 : f32 to vector<8x128xf32>
    %21 = arith.select %19, %15, %20 : vector<8x128xi1>, vector<8x128xf32>
    %c0_8 = arith.constant 0 : index
    %c0_9 = arith.constant 0 : index
    %22 = vector.load %arg5[%c0_8, %c0_9] : memref<8x128xf32, #tpu.memory_space<vmem>>, vector<8x128xf32>
    %23 = vector.shape_cast %21 : vector<8x128xf32> to vector<1x8x128xf32>
    %cst_10 = arith.constant dense<0.000000e+00> : vector<8x128xf32>
    %24 = vector.multi_reduction <add>, %23, %cst_10 [0] : vector<1x8x128xf32> to vector<8x128xf32>
    %25 = arith.addf %22, %24 : vector<8x128xf32>
    %c0_11 = arith.constant 0 : index
    %c0_12 = arith.constant 0 : index
    %26 = vector.load %arg5[%c0_11, %c0_12] : memref<8x128xf32, #tpu.memory_space<vmem>>, vector<8x128xf32>
    tpu.vector_store %arg5[%c0_11, %c0_12], %25 {strides = array<i32>} : memref<8x128xf32, #tpu.memory_space<vmem>>, vector<8x128xf32>,
    return
  }
  func.func @transform_0(%arg0: i32, %arg1: i32) -> (i32, i32) {
    %c1_i32 = arith.constant 1 : i32
    %0 = arith.muli %arg0, %c1_i32 : i32
    %1 = arith.addi %0, %arg1 : i32
    %c0_i32 = arith.constant 0 : i32
    %2 = arith.minsi %1, %c0_i32 : i32
    %c0_i32_0 = arith.constant 0 : i32
    %c0_i32_1 = arith.constant 0 : i32
    return %2, %c0_i32_0 : i32, i32
  }
  func.func @transform_1(%arg0: i32, %arg1: i32) -> (i32, i32) {
    %c0_i32 = arith.constant 0 : i32
    %c0_i32_0 = arith.constant 0 : i32
    %c0_i32_1 = arith.constant 0 : i32
    return %c0_i32, %c0_i32_0 : i32, i32
  }
  func.func @transform_2(%arg0: i32, %arg1: i32) -> (i32, i32) {
    %c0_i32 = arith.constant 0 : i32
    %c0_i32_0 = arith.constant 0 : i32
    %c0_i32_1 = arith.constant 0 : i32
    return %c0_i32, %c0_i32_0 : i32, i32
  }
  func.func @transform_3(%arg0: i32, %arg1: i32) -> (i32, i32) {
    %c0_i32 = arith.constant 0 : i32
    %c0_i32_0 = arith.constant 0 : i32
    return %arg0, %c0_i32 : i32, i32
  }
}

</mosaic_0001>

<llo_original>
// kernel: tpu_custom_call.1
$region0: #{tpu_custom_call.1}
  #allocation0 [shape = 'u32[]', space=smem, size = 0x4, offset = 0x4, fixed_abs, tag = 'smem constant byte address 0x4 - core index']
  #allocation1 [shape = 'u32[72,128]{1,0:T(1,128)}', space=vmem, size = 0x9000, scoped, tag = 'internal scratch']
  %s0 = inlined_call_operand.hbm [shape: f32[8,128], index: 0, kind: input, shape index: {}]
  %s1 = inlined_call_operand.hbm [shape: f32[128,128], index: 1, kind: input, shape index: {}]
  %s2 = inlined_call_operand.vmem [shape: f32[1,128], index: 2, kind: input, shape index: {}]
  %s3 = inlined_call_operand.hbm [shape: f32[8,128], index: 3, kind: output, shape index: {}]
  %s4 = sld [smem:[#allocation0]]
  $region34: #{tpu_custom_call.1} parent=0
    _
  %s6 = ssub.s32 1, %s4
  %s7 = scalar_select 0, %s6, %s4
  $region1: #{tpu_custom_call.1} parent=0
    #allocation2 [shape = 'u8[4096]{0}', space=vmem, size = 0x1000, scoped, tag = 'input window, operand 0, single buffered']
    #allocation3 [shape = 's32[1]{0}', space=sflag, size = 0x4, scoped, tag = 'scoped memory for tpu_custom_call.1']
    #allocation4 [shape = 's32[1]{0}', space=sflag, size = 0x4, scoped, tag = 'scoped memory for tpu_custom_call.1']
    #allocation5 [shape = 'u8[65536]{0}', space=vmem, size = 0x10000, scoped, tag = 'input window, operand 1, single buffered']
    #allocation6 [shape = 's32[1]{0}', space=sflag, size = 0x4, scoped, tag = 'scoped memory for tpu_custom_call.1']
    #allocation7 [shape = 'u8[4096]{0}', space=vmem, size = 0x1000, scoped, tag = 'output window, operand 0, single buffered']
    %8 = vsyncpa [#allocation3], 0
    %9 = vsyncpa [#allocation6], 0
    %10 = vsyncpa [#allocation4], 0
    // Predicated region
    $region2: #{tpu_custom_call.1} parent=1 // pred_check
      _
    $region3: #{tpu_custom_call.1} parent=1 // pred_check_branch
      %12 = sbr.rel (0) target = $region5
    $region4: #{tpu_custom_call.1} parent=1 // pred_region
      %s13 = sadd.s32 0, 0
      %p14 = scmp.lt.s32.totalorder %s13, 0
      %s15 = scalar_select %p14, %s13, 0
      %17 = vsyncadd [#allocation3], 0
      %s18 = smul.addr %s15, 8
      %s19 = scalar_lea.hbm %s0, %s18
      %s21 = sshll.u32 %s19, 4
      %s22 = int_to_ptr.hbm [resolvable:$true] %s21
      %s23 = sshll.u32 [#allocation2], 4
      %s24 = int_to_ptr.vmem [resolvable:$true] %s23
      %26 = dma.hbm_to_vmem [thread:$0]  %s22, 128, %s24, [#allocation3]
    $region5: #{tpu_custom_call.1} parent=1 // pred_fallthru
      _
    // Predicated region
    $region6: #{tpu_custom_call.1} parent=1 // pred_check
      _
    $region7: #{tpu_custom_call.1} parent=1 // pred_check_branch
      %28 = sbr.rel (0) target = $region9
    $region8: #{tpu_custom_call.1} parent=1 // pred_region
      %30 = vsyncadd [#allocation6], 0
      %s31 = sshll.u32 %s1, 4
      %s32 = int_to_ptr.hbm [resolvable:$true] %s31
      %s33 = sshll.u32 [#allocation5], 4
      %s34 = int_to_ptr.vmem [resolvable:$true] %s33
      %39 = dma.hbm_to_vmem [thread:$0]  %s32, 2048, %s34, [#allocation6], 128, 128, 8
    $region9: #{tpu_custom_call.1} parent=1 // pred_fallthru
      _
    // Predicated region
    $region10: #{tpu_custom_call.1} parent=1 // pred_check
      _
    $region11: #{tpu_custom_call.1} parent=1 // pred_check_branch
      %41 = sbr.rel (0) target = $region13
    $region12: #{tpu_custom_call.1} parent=1 // pred_region
      _
    $region13: #{tpu_custom_call.1} parent=1 // pred_fallthru
      _
    // Predicated region
    $region14: #{tpu_custom_call.1} parent=1 // pred_check
      _
    $region15: #{tpu_custom_call.1} parent=1 // pred_check_branch
      %43 = sbr.rel (0) target = $region17
    $region16: #{tpu_custom_call.1} parent=1 // pred_region
      %45 = dma.done [#allocation3], 128
    $region17: #{tpu_custom_call.1} parent=1 // pred_fallthru
      _
    // Predicated region
    $region18: #{tpu_custom_call.1} parent=1 // pred_check
      _
    $region19: #{tpu_custom_call.1} parent=1 // pred_check_branch
      %47 = sbr.rel (0) target = $region21
    $region20: #{tpu_custom_call.1} parent=1 // pred_region
      %49 = dma.done [#allocation6], 2048
    $region21: #{tpu_custom_call.1} parent=1 // pred_fallthru
      _
    %s50 = sadd.s32 0, 0
    %p51 = scmp.lt.s32.totalorder %s50, 0
    %s52 = scalar_select %p51, %s50, 0
    %p53 = scmp.eq.s32.totalorder 0, 0
    // Predicated region
    $region22: #{tpu_custom_call.1} parent=1 // pred_check
      %p54 = pneg %p53
    $region23: #{tpu_custom_call.1} parent=1 // pred_check_branch
      %56 = sbr.rel (%p54) target = $region25
    $region24: #{tpu_custom_call.1} parent=1 // pred_region
      %57 = vst [vmem:[#allocation7] sm:$0xff] 0.0
    $region25: #{tpu_custom_call.1} parent=1 // pred_fallthru
      _
    %s58 = sadd.s32 0, 0
    %s59 = smul.u32 %s58, 8
    %v60 = vlaneseq
    %v61 = vshrl.u32 %v60, 7
    %v62 = vstv %s59
    %v63 = vadd.s32 %v62, %v61
    %v64 = vld [vmem:[#allocation2] sm:$0xff]
    %v65 = vld [vmem:[#allocation5] sm:$0xff]
    %v66 = vld [vmem:[#allocation5 + $0x8] sm:$0xff]
    %v67 = vld [vmem:[#allocation5 + $0x10] sm:$0xff]
    %v68 = vld [vmem:[#allocation5 + $0x18] sm:$0xff]
    %v69 = vld [vmem:[#allocation5 + $0x20] sm:$0xff]
    %v70 = vld [vmem:[#allocation5 + $0x28] sm:$0xff]
    %v71 = vld [vmem:[#allocation5 + $0x30] sm:$0xff]
    %v72 = vld [vmem:[#allocation5 + $0x38] sm:$0xff]
    %v73 = vld [vmem:[#allocation5 + $0x40] sm:$0xff]
    %v74 = vld [vmem:[#allocation5 + $0x48] sm:$0xff]
    %v75 = vld [vmem:[#allocation5 + $0x50] sm:$0xff]
    %v76 = vld [vmem:[#allocation5 + $0x58] sm:$0xff]
    %v77 = vld [vmem:[#allocation5 + $0x60] sm:$0xff]
    %v78 = vld [vmem:[#allocation5 + $0x68] sm:$0xff]
    %v79 = vld [vmem:[#allocation5 + $0x70] sm:$0xff]
    %v80 = vld [vmem:[#allocation5 + $0x78] sm:$0xff]
    %v81 = vld [vmem:[%s2] sm:$0x1]
    %v83 = vperm.slane %v81, 0
    %85 = vmatpush.msra.mxu0 %v80
    %86 = vmatpush.msra.mxu0 %v79
    %87 = vmatpush.msra.mxu0 %v78
    %88 = vmatpush.msra.mxu0 %v77
    %89 = vmatpush.msra.mxu0 %v76
    %90 = vmatpush.msra.mxu0 %v75
    %91 = vmatpush.msra.mxu0 %v74
    %92 = vmatpush.msra.mxu0 %v73
    %93 = vmatpush.msra.mxu0 %v72
    %94 = vmatpush.msra.mxu0 %v71
    %95 = vmatpush.msra.mxu0 %v70
    %96 = vmatpush.msra.mxu0 %v69
    %97 = vmatpush.msra.mxu0 %v68
    %98 = vmatpush.msra.mxu0 %v67
    %99 = vmatpush.msra.mxu0 %v66
    %100 = vmatpush.msra.mxu0 %v65
    %101 = vmatmul.f32.gmra.mxu0 %v64
    %v102 = vpop.f32.mrf.mxu0
    %v103 = vadd.f32 %v83, %v102
    %104 = vdwg.mxu0
    %v105 = vtanh.pop %v103
    %vm106 = vcmp.lt.s32.totalorder %v63, 8
    %v107 = vsel %vm106, 1, 0
    %vm108 = vcmp.eq.s32.totalorder %v107, 1
    %v109 = vsel %vm108, %v105, 0.0
    %v110 = vld [vmem:[#allocation7] sm:$0xff]
    %v111 = vadd.f32 %v109, 0.0
    %v112 = vadd.f32 %v110, %v111
    %113 = vst [vmem:[#allocation7] sm:$0xff] %v112
    // Predicated region
    $region26: #{tpu_custom_call.1} parent=1 // pred_check
      _
    $region27: #{tpu_custom_call.1} parent=1 // pred_check_branch
      %115 = sbr.rel (0) target = $region29
    $region28: #{tpu_custom_call.1} parent=1 // pred_region
      %117 = vsyncadd [#allocation4], 0
      %s119 = sshll.u32 [#allocation7], 4
      %s120 = int_to_ptr.vmem [resolvable:$true] %s119
      %s121 = sshll.u32 %s3, 4
      %s122 = int_to_ptr.hbm [resolvable:$true] %s121
      %124 = dma.vmem_to_hbm [thread:$0]  %s120, 128, %s122, [#allocation4]
    $region29: #{tpu_custom_call.1} parent=1 // pred_fallthru
      _
    // Predicated region
    $region30: #{tpu_custom_call.1} parent=1 // pred_check
      _
    $region31: #{tpu_custom_call.1} parent=1 // pred_check_branch
      %126 = sbr.rel (0) target = $region33
    $region32: #{tpu_custom_call.1} parent=1 // pred_region
      %128 = dma.done [#allocation4], 128
    $region33: #{tpu_custom_call.1} parent=1 // pred_fallthru
      _
    %129 = vsyncpa [#allocation3], 1
    %130 = vsyncpa [#allocation6], 1
    %131 = vsyncpa [#allocation4], 1

</llo_original>
